<compile_context>
chip_gen: v7x
topology: tpu7x:2x2x1
jax: 0.10.0
libtpu: 0.0.40
codegen_flags: <defaults>
</compile_context>

<pallas_src>
import functools

import numpy as np
import jax
import jax.numpy as jnp
from jax import lax
from jax.experimental import pallas as pl
from jax.experimental.pallas import tpu as pltpu

BN_EPS = 1e-5


# -----------------------------------------------------------------------------
# Tiling / budget helpers
# -----------------------------------------------------------------------------
def _vmem_budget_bytes():
    """Working-set budget for the double-buffered pipeline.

    Conservative default that fits v7x's 64 MiB physical VMEM with headroom;
    larger on v5e/v6e (128 MiB) when hardware info is available.
    """
    budget = 24 << 20
    try:
        cap = int(pltpu.get_tpu_info().vmem_capacity_bytes)
        budget = max(16 << 20, min(cap // 3, 40 << 20))
    except Exception:
        pass
    return budget


def _pick_tile(P, C, C_out, x_itemsize, budget_bytes):
    """Pick the pixel-tile size T (sublane dim of the (4,T,C) block).

    Accounts for double-buffering of x and the output, plus the (also
    double-buffered) constant-index weight / scale / shift blocks.
    Returns (T, P_pad, vmem_estimate_bytes).
    """
    bytes_per_t = 2 * 4 * C * x_itemsize + 2 * C_out * 4       # x + out, 2 bufs each
    fixed = 2 * C * C_out * 4 + 4 * C * 4 + (2 << 20)           # w + scale/shift + slack
    t_max = (budget_bytes - fixed) // bytes_per_t
    t_max = int(max(16, min(t_max, 1024)))
    t_max -= t_max % 16                                         # bf16 sublane tiling safe

    if P <= t_max:
        t = -(-P // 16) * 16
        return t, t, fixed + bytes_per_t * t

    t_pick = None
    for t in range(t_max, 15, -16):                             # prefer a divisor of P
        if P % t == 0:
            t_pick = t
            break
    if t_pick is None or t_pick < 128:
        t_pick = t_max                                          # pad instead
    p_pad = -(-P // t_pick) * t_pick
    return t_pick, p_pad, fixed + bytes_per_t * t_pick


def _default_matmul_dtype():
    """bf16 matmul operands on v5e (weak f32 MXU); f32 elsewhere."""
    try:
        kind = jax.devices()[0].device_kind.lower()
    except Exception:
        return jnp.float32
    if "v5 lite" in kind or "v5lite" in kind or "v5e" in kind:
        return jnp.bfloat16
    return jnp.float32


# -----------------------------------------------------------------------------
# Kernel 1: per-tile BN partial statistics (fully parallel grid, no scratch)
# -----------------------------------------------------------------------------
def bn_stats_kernel(x_ref, sum_ref, sq_ref):
    """x_ref: (4, T, C) pixel tile.  Writes this tile's per-channel sum and
    sum-of-squares to its own (1, 1, C) output blocks (no cross-step state)."""
    x = x_ref[...].astype(jnp.float32)                     # (4, T, C)
    ps = jnp.sum(x, axis=1, keepdims=True)                 # (4, 1, C) sublane reduce
    pq = jnp.sum(x * x, axis=1, keepdims=True)             # (4, 1, C)
    sum_ref[...] = jnp.sum(ps, axis=0, keepdims=True)      # (1, 1, C)
    sq_ref[...] = jnp.sum(pq, axis=0, keepdims=True)       # (1, 1, C)


# -----------------------------------------------------------------------------
# Kernel 2: folded BN + ReLU + 2x2 avg-pool + 1x1 conv (pool before conv)
# -----------------------------------------------------------------------------
def transition_main_kernel(x_ref, scale_ref, shift_ref, w_ref, o_ref, *, matmul_dtype):
    """x_ref: (4, T, C); scale/shift: (1, C); w_ref: (C, C_out); o_ref: (T, C_out)."""
    x = x_ref[...].astype(jnp.float32)                     # (4, T, C)
    y = jnp.maximum(x * scale_ref[...] + shift_ref[...], 0.0)   # folded BN + ReLU
    p = jnp.sum(y, axis=0)                                 # (T, C): 2x2 pool (0.25 pre-folded)
    # Canonical MXU layout: contracting dim C is lanes of p and sublanes of w^T
    # -> no operand / result transposes.
    z = jnp.dot(p.astype(matmul_dtype), w_ref[...],
                preferred_element_type=jnp.float32)        # (T, C_out)
    o_ref[...] = z.astype(o_ref.dtype)


# -----------------------------------------------------------------------------
# Wrapper
# -----------------------------------------------------------------------------
def transition_forward(x_nchw, gamma, beta, conv_w, *, matmul_dtype=None):
    """x_nchw: (N, C, H, W); conv_w: (C//2, C) (or (C//2, C, 1, 1))."""
    if matmul_dtype is None:
        matmul_dtype = _default_matmul_dtype()

    N, C, H, W = x_nchw.shape
    C_out = int(conv_w.shape[0])
    Hp, Wp = H // 2, W // 2
    # AvgPool2d(2) drops a trailing odd row/col.
    # TODO(synk): for odd H/W the BN stats here exclude the dropped row/col
    #             (PyTorch includes them); transitions use even maps in practice.
    x = x_nchw[:, :, : Hp * 2, : Wp * 2]
    if x.dtype not in (jnp.float32, jnp.bfloat16):
        x = x.astype(jnp.float32)

    S = Hp * Wp
    P = N * S                                   # batch folded into the pixel axis

    # Single layout pass in XLA: NCHW -> (4, N*Hp*Wp, C) space-to-depth,
    # channels-last.  Input dtype (f32 or bf16) is preserved in HBM.
    x_r = x.reshape(N, C, Hp, 2, Wp, 2)
    x_r = jnp.transpose(x_r, (3, 5, 0, 2, 4, 1)).reshape(4, P, C)

    budget = _vmem_budget_bytes()
    T, P_pad, vmem_est = _pick_tile(P, C, C_out, x_r.dtype.itemsize, budget)
    if P_pad != P:
        # Zero padding: contributes 0 to the stats (count uses the true N*H*W)
        # and padded outputs are sliced off below.
        x_r = jnp.pad(x_r, ((0, 0), (0, P_pad - P), (0, 0)))
    n_tiles = P_pad // T

    compiler_params = pltpu.CompilerParams(
        dimension_semantics=("parallel",),
        vmem_limit_bytes=int(min(max(vmem_est + (8 << 20), 32 << 20), 56 << 20)),
    )

    x_spec = pl.BlockSpec((4, T, C), lambda j: (0, j, 0))
    stat_spec = pl.BlockSpec((1, 1, C), lambda j: (j, 0, 0))

    # ---- Phase 1: per-tile partial sums (parallel grid, no cross-step state).
    sums, sqs = pl.pallas_call(
        bn_stats_kernel,
        out_shape=(jax.ShapeDtypeStruct((n_tiles, 1, C), jnp.float32),
                   jax.ShapeDtypeStruct((n_tiles, 1, C), jnp.float32)),
        grid_spec=pltpu.PrefetchScalarGridSpec(
            num_scalar_prefetch=0,
            grid=(n_tiles,),
            in_specs=[x_spec],
            out_specs=(stat_spec, stat_spec),
        ),
        compiler_params=compiler_params,
    )(x_r)

    # ---- Finalize the folded BN affine in tiny XLA ops (0.25 pool factor baked in).
    count = float(N * Hp * 2 * Wp * 2)
    s = jnp.sum(sums, axis=0).reshape(C)
    q = jnp.sum(sqs, axis=0).reshape(C)
    mean = s / count
    # TODO(synk): E[x^2]-mean^2 can cancel when |mean| >> std; a shifted /
    #             Welford-style accumulation would be more robust in production.
    var = jnp.maximum(q / count - mean * mean, 0.0)
    g_inv_std = gamma.astype(jnp.float32) * lax.rsqrt(var + BN_EPS)
    scale = (0.25 * g_inv_std).reshape(1, C)
    shift = (0.25 * (beta.astype(jnp.float32) - mean * g_inv_std)).reshape(1, C)

    w_t = conv_w.reshape(C_out, C).T.astype(matmul_dtype)        # (C, C_out)

    # ---- Phase 2: normalize + ReLU + pool + 1x1 conv, parallel over pixel tiles.
    out_flat = pl.pallas_call(
        functools.partial(transition_main_kernel, matmul_dtype=matmul_dtype),
        out_shape=jax.ShapeDtypeStruct((P_pad, C_out), x_r.dtype),
        grid_spec=pltpu.PrefetchScalarGridSpec(
            num_scalar_prefetch=0,
            grid=(n_tiles,),
            in_specs=[x_spec,
                      pl.BlockSpec((1, C), lambda j: (0, 0)),
                      pl.BlockSpec((1, C), lambda j: (0, 0)),
                      pl.BlockSpec((C, C_out), lambda j: (0, 0))],
            out_specs=pl.BlockSpec((T, C_out), lambda j: (j, 0)),
        ),
        compiler_params=compiler_params,
    )(x_r, scale, shift, w_t)

    # (P, C_out) channels-last -> NCHW (output is 1/8 of x's volume; cheap).
    out = out_flat[:P].reshape(N, Hp, Wp, C_out)
    return jnp.transpose(out, (0, 3, 1, 2))


# -----------------------------------------------------------------------------
# Pure-JAX reference (mirrors the PyTorch module, training-mode BN)
# -----------------------------------------------------------------------------
def transition_reference(x, gamma, beta, conv_w):
    N, C, H, W = x.shape
    mean = jnp.mean(x, axis=(0, 2, 3), keepdims=True)
    var = jnp.mean((x - mean) ** 2, axis=(0, 2, 3), keepdims=True)
    y = (x - mean) / jnp.sqrt(var + BN_EPS)
    y = y * gamma.reshape(1, C, 1, 1) + beta.reshape(1, C, 1, 1)
    y = jnp.maximum(y, 0.0)
    z = jnp.einsum("oc,nchw->nohw", conv_w.reshape(conv_w.shape[0], C), y)
    z = z.reshape(N, conv_w.shape[0], H // 2, 2, W // 2, 2)
    return jnp.mean(z, axis=(3, 5))


if __name__ == "__main__":
    N, C, H, W = 2, 8, 16, 16
    C_out = C // 2

    key = jax.random.PRNGKey(0)
    kx, kw = jax.random.split(key)

    x = jax.random.normal(kx, (N, C, H, W), dtype=jnp.float32)
    gamma = 1.0 + 0.1 * jnp.arange(C, dtype=jnp.float32)    # BN weight
    beta = 0.05 * jnp.arange(C, dtype=jnp.float32)          # BN bias
    conv_w = 0.1 * jax.random.normal(kw, (C_out, C), dtype=jnp.float32)

    out = jax.jit(transition_forward)(x, gamma, beta, conv_w)
    out = jax.block_until_ready(out)

    ref = transition_reference(x, gamma, beta, conv_w)
    assert out.shape == (N, C_out, H // 2, W // 2), out.shape
    tol = 3e-2 if _default_matmul_dtype() == jnp.bfloat16 else 1e-4
    np.testing.assert_allclose(np.asarray(out), np.asarray(ref), rtol=tol, atol=tol)

    print("KERNEL_OK")
</pallas_src>

<mosaic_0001>
module attributes {stable_mosaic.version = 11 : i64} {
  func.func @bn_stats_kernel(%arg0: i32, %arg1: memref<4x128x8xf32, #tpu.memory_space<vmem>>, %arg2: memref<1x1x8xf32, #tpu.memory_space<vmem>>, %arg3: memref<1x1x8xf32, #tpu.memory_space<vmem>>) attributes {dimension_semantics = [#tpu.dimension_semantics<parallel>], iteration_bounds = array<i64: 1>, scalar_prefetch = 0 : i64, scratch_operands = 0 : i64, tpu.core_type = #tpu.core_type<tc>, window_params = [{transform_indices = @transform_0, window_bounds = array<i64: 4, 128, 8>}, {transform_indices = @transform_1, window_bounds = array<i64: 1, 1, 8>}, {transform_indices = @transform_2, window_bounds = array<i64: 1, 1, 8>}]} {
    %c0 = arith.constant 0 : index
    %c0_0 = arith.constant 0 : index
    %c0_1 = arith.constant 0 : index
    %0 = vector.load %arg1[%c0, %c0_0, %c0_1] : memref<4x128x8xf32, #tpu.memory_space<vmem>>, vector<4x128x8xf32>
    %cst = arith.constant dense<0.000000e+00> : vector<4x8xf32>
    %1 = vector.multi_reduction <add>, %0, %cst [1] : vector<4x128x8xf32> to vector<4x8xf32>
    %2 = vector.shape_cast %1 : vector<4x8xf32> to vector<4x1x8xf32>
    %3 = arith.mulf %0, %0 : vector<4x128x8xf32>
    %cst_2 = arith.constant dense<0.000000e+00> : vector<4x8xf32>
    %4 = vector.multi_reduction <add>, %3, %cst_2 [1] : vector<4x128x8xf32> to vector<4x8xf32>
    %5 = vector.shape_cast %4 : vector<4x8xf32> to vector<4x1x8xf32>
    %cst_3 = arith.constant dense<0.000000e+00> : vector<1x8xf32>
    %6 = vector.multi_reduction <add>, %2, %cst_3 [0] : vector<4x1x8xf32> to vector<1x8xf32>
    %7 = vector.shape_cast %6 : vector<1x8xf32> to vector<1x1x8xf32>
    %c0_4 = arith.constant 0 : index
    %c0_5 = arith.constant 0 : index
    %c0_6 = arith.constant 0 : index
    %8 = vector.load %arg2[%c0_4, %c0_5, %c0_6] : memref<1x1x8xf32, #tpu.memory_space<vmem>>, vector<1x1x8xf32>
    tpu.vector_store %arg2[%c0_4, %c0_5, %c0_6], %7 {strides = array<i32>} : memref<1x1x8xf32, #tpu.memory_space<vmem>>, vector<1x1x8xf32>,
    %cst_7 = arith.constant dense<0.000000e+00> : vector<1x8xf32>
    %9 = vector.multi_reduction <add>, %5, %cst_7 [0] : vector<4x1x8xf32> to vector<1x8xf32>
    %10 = vector.shape_cast %9 : vector<1x8xf32> to vector<1x1x8xf32>
    %c0_8 = arith.constant 0 : index
    %c0_9 = arith.constant 0 : index
    %c0_10 = arith.constant 0 : index
    %11 = vector.load %arg3[%c0_8, %c0_9, %c0_10] : memref<1x1x8xf32, #tpu.memory_space<vmem>>, vector<1x1x8xf32>
    tpu.vector_store %arg3[%c0_8, %c0_9, %c0_10], %10 {strides = array<i32>} : memref<1x1x8xf32, #tpu.memory_space<vmem>>, vector<1x1x8xf32>,
    return
  }
  func.func @transform_0(%arg0: i32) -> (i32, i32, i32) {
    %c0_i32 = arith.constant 0 : i32
    %c0_i32_0 = arith.constant 0 : i32
    %c0_i32_1 = arith.constant 0 : i32
    return %c0_i32, %arg0, %c0_i32_0 : i32, i32, i32
  }
  func.func @transform_1(%arg0: i32) -> (i32, i32, i32) {
    %c0_i32 = arith.constant 0 : i32
    %c0_i32_0 = arith.constant 0 : i32
    %c0_i32_1 = arith.constant 0 : i32
    return %arg0, %c0_i32, %c0_i32_0 : i32, i32, i32
  }
  func.func @transform_2(%arg0: i32) -> (i32, i32, i32) {
    %c0_i32 = arith.constant 0 : i32
    %c0_i32_0 = arith.constant 0 : i32
    %c0_i32_1 = arith.constant 0 : i32
    return %arg0, %c0_i32, %c0_i32_0 : i32, i32, i32
  }
}

module attributes {stable_mosaic.version = 11 : i64} {
  func.func @transition_main_kernel(%arg0: i32, %arg1: memref<4x128x8xf32, #tpu.memory_space<vmem>>, %arg2: memref<1x8xf32, #tpu.memory_space<vmem>>, %arg3: memref<1x8xf32, #tpu.memory_space<vmem>>, %arg4: memref<8x4xf32, #tpu.memory_space<vmem>>, %arg5: memref<128x4xf32, #tpu.memory_space<vmem>>) attributes {dimension_semantics = [#tpu.dimension_semantics<parallel>], iteration_bounds = array<i64: 1>, scalar_prefetch = 0 : i64, scratch_operands = 0 : i64, tpu.core_type = #tpu.core_type<tc>, window_params = [{transform_indices = @transform_0, window_bounds = array<i64: 4, 128, 8>}, {pipeline_mode = #tpu.pipeline_mode<synchronous>, transform_indices = @transform_1, window_bounds = array<i64: 1, 8>}, {pipeline_mode = #tpu.pipeline_mode<synchronous>, transform_indices = @transform_2, window_bounds = array<i64: 1, 8>}, {pipeline_mode = #tpu.pipeline_mode<synchronous>, transform_indices = @transform_3, window_bounds = array<i64: 8, 4>}, {transform_indices = @transform_4, window_bounds = array<i64: 128, 4>}]} {
    %c0 = arith.constant 0 : index
    %c0_0 = arith.constant 0 : index
    %c0_1 = arith.constant 0 : index
    %0 = vector.load %arg1[%c0, %c0_0, %c0_1] : memref<4x128x8xf32, #tpu.memory_space<vmem>>, vector<4x128x8xf32>
    %c0_2 = arith.constant 0 : index
    %c0_3 = arith.constant 0 : index
    %1 = vector.load %arg2[%c0_2, %c0_3] : memref<1x8xf32, #tpu.memory_space<vmem>>, vector<1x8xf32>
    %2 = vector.shape_cast %1 : vector<1x8xf32> to vector<1x1x8xf32>
    %3 = vector.broadcast %2 : vector<1x1x8xf32> to vector<4x128x8xf32>
    %4 = arith.mulf %0, %3 : vector<4x128x8xf32>
    %c0_4 = arith.constant 0 : index
    %c0_5 = arith.constant 0 : index
    %5 = vector.load %arg3[%c0_4, %c0_5] : memref<1x8xf32, #tpu.memory_space<vmem>>, vector<1x8xf32>
    %6 = vector.shape_cast %5 : vector<1x8xf32> to vector<1x1x8xf32>
    %7 = vector.broadcast %6 : vector<1x1x8xf32> to vector<4x128x8xf32>
    %8 = arith.addf %4, %7 : vector<4x128x8xf32>
    %cst = arith.constant 0.000000e+00 : f32
    %9 = vector.broadcast %cst : f32 to vector<4x128x8xf32>
    %10 = arith.maximumf %8, %9 : vector<4x128x8xf32>
    %cst_6 = arith.constant dense<0.000000e+00> : vector<128x8xf32>
    %11 = vector.multi_reduction <add>, %10, %cst_6 [0] : vector<4x128x8xf32> to vector<128x8xf32>
    %c0_7 = arith.constant 0 : index
    %c0_8 = arith.constant 0 : index
    %12 = vector.load %arg4[%c0_7, %c0_8] : memref<8x4xf32, #tpu.memory_space<vmem>>, vector<8x4xf32>
    %cst_9 = arith.constant dense<0.000000e+00> : vector<128x4xf32>
    %13 = tpu.matmul %11, %12, %cst_9 {dimension_numbers = #tpu.dot_dimension_numbers<[1], [0], [0], [1], [0, 0, 1, 1], [], []>} : vector<128x8xf32>, vector<8x4xf32>, vector<128x4xf32> -> vector<128x4xf32>
    %c0_10 = arith.constant 0 : index
    %c0_11 = arith.constant 0 : index
    %14 = vector.load %arg5[%c0_10, %c0_11] : memref<128x4xf32, #tpu.memory_space<vmem>>, vector<128x4xf32>
    tpu.vector_store %arg5[%c0_10, %c0_11], %13 {strides = array<i32>} : memref<128x4xf32, #tpu.memory_space<vmem>>, vector<128x4xf32>,
    return
  }
  func.func @transform_0(%arg0: i32) -> (i32, i32, i32) {
    %c0_i32 = arith.constant 0 : i32
    %c0_i32_0 = arith.constant 0 : i32
    %c0_i32_1 = arith.constant 0 : i32
    return %c0_i32, %arg0, %c0_i32_0 : i32, i32, i32
  }
  func.func @transform_1(%arg0: i32) -> (i32, i32) {
    %c0_i32 = arith.constant 0 : i32
    %c0_i32_0 = arith.constant 0 : i32
    %c0_i32_1 = arith.constant 0 : i32
    return %c0_i32, %c0_i32_0 : i32, i32
  }
  func.func @transform_2(%arg0: i32) -> (i32, i32) {
    %c0_i32 = arith.constant 0 : i32
    %c0_i32_0 = arith.constant 0 : i32
    %c0_i32_1 = arith.constant 0 : i32
    return %c0_i32, %c0_i32_0 : i32, i32
  }
  func.func @transform_3(%arg0: i32) -> (i32, i32) {
    %c0_i32 = arith.constant 0 : i32
    %c0_i32_0 = arith.constant 0 : i32
    %c0_i32_1 = arith.constant 0 : i32
    return %c0_i32, %c0_i32_0 : i32, i32
  }
  func.func @transform_4(%arg0: i32) -> (i32, i32) {
    %c0_i32 = arith.constant 0 : i32
    %c0_i32_0 = arith.constant 0 : i32
    return %arg0, %c0_i32 : i32, i32
  }
}

</mosaic_0001>

<llo_original>
// kernel: transition_forward.2
$region0: #{transition_forward.2}
  #allocation0 [shape = 'u32[]', space=smem, size = 0x4, offset = 0x4, fixed_abs, tag = 'smem constant byte address 0x4 - core index']
  #allocation1 [shape = 'u32[144,128]{1,0:T(1,128)}', space=vmem, size = 0x12000, scoped, tag = 'internal scratch']
  %s0 = inlined_call_operand.vmem [shape: f32[4,128,8], index: 0, kind: input, shape index: {}]
  %s1 = inlined_call_operand.vmem [shape: f32[1,1,8], index: 1, kind: output, shape index: {0}]
  %s2 = inlined_call_operand.vmem [shape: f32[1,1,8], index: 2, kind: output, shape index: {1}]
  %3 = xla_tuple %s1, %s2
  %s4 = sld [smem:[#allocation0]]
  $region22: #{transition_forward.2} parent=0
    _
  %s6 = ssub.s32 1, %s4
  %s7 = scalar_select 0, %s6, %s4
  // Predicated region
  $region2: #{transition_forward.2} parent=0 // pred_check
    _
  $region3: #{transition_forward.2} parent=0 // pred_check_branch
    %9 = sbr.rel (0) target = $region5
  $region4: #{transition_forward.2} parent=0 // pred_region
    _
  $region5: #{transition_forward.2} parent=0 // pred_fallthru
    _
  %v10 = vld [vmem:[%s0] sm:$0xff]
  %v11 = vld [vmem:[%s0 + $0x8] sm:$0xff]
  %v12 = vld [vmem:[%s0 + $0x10] sm:$0xff]
  %v13 = vld [vmem:[%s0 + $0x18] sm:$0xff]
  %v14 = vld [vmem:[%s0 + $0x20] sm:$0xff]
  %v15 = vld [vmem:[%s0 + $0x28] sm:$0xff]
  %v16 = vld [vmem:[%s0 + $0x30] sm:$0xff]
  %v17 = vld [vmem:[%s0 + $0x38] sm:$0xff]
  %v18 = vld [vmem:[%s0 + $0x40] sm:$0xff]
  %v19 = vld [vmem:[%s0 + $0x48] sm:$0xff]
  %v20 = vld [vmem:[%s0 + $0x50] sm:$0xff]
  %v21 = vld [vmem:[%s0 + $0x58] sm:$0xff]
  %v22 = vld [vmem:[%s0 + $0x60] sm:$0xff]
  %v23 = vld [vmem:[%s0 + $0x68] sm:$0xff]
  %v24 = vld [vmem:[%s0 + $0x70] sm:$0xff]
  %v25 = vld [vmem:[%s0 + $0x78] sm:$0xff]
  %v26 = vld [vmem:[%s0 + $0x80] sm:$0xff]
  %v27 = vld [vmem:[%s0 + $0x88] sm:$0xff]
  %v28 = vld [vmem:[%s0 + $0x90] sm:$0xff]
  %v29 = vld [vmem:[%s0 + $0x98] sm:$0xff]
  %v30 = vld [vmem:[%s0 + $0xa0] sm:$0xff]
  %v31 = vld [vmem:[%s0 + $0xa8] sm:$0xff]
  %v32 = vld [vmem:[%s0 + $0xb0] sm:$0xff]
  %v33 = vld [vmem:[%s0 + $0xb8] sm:$0xff]
  %v34 = vld [vmem:[%s0 + $0xc0] sm:$0xff]
  %v35 = vld [vmem:[%s0 + $0xc8] sm:$0xff]
  %v36 = vld [vmem:[%s0 + $0xd0] sm:$0xff]
  %v37 = vld [vmem:[%s0 + $0xd8] sm:$0xff]
  %v38 = vld [vmem:[%s0 + $0xe0] sm:$0xff]
  %v39 = vld [vmem:[%s0 + $0xe8] sm:$0xff]
  %v40 = vld [vmem:[%s0 + $0xf0] sm:$0xff]
  %v41 = vld [vmem:[%s0 + $0xf8] sm:$0xff]
  %v42 = vld [vmem:[%s0 + $0x100] sm:$0xff]
  %v43 = vld [vmem:[%s0 + $0x108] sm:$0xff]
  %v44 = vld [vmem:[%s0 + $0x110] sm:$0xff]
  %v45 = vld [vmem:[%s0 + $0x118] sm:$0xff]
  %v46 = vld [vmem:[%s0 + $0x120] sm:$0xff]
  %v47 = vld [vmem:[%s0 + $0x128] sm:$0xff]
  %v48 = vld [vmem:[%s0 + $0x130] sm:$0xff]
  %v49 = vld [vmem:[%s0 + $0x138] sm:$0xff]
  %v50 = vld [vmem:[%s0 + $0x140] sm:$0xff]
  %v51 = vld [vmem:[%s0 + $0x148] sm:$0xff]
  %v52 = vld [vmem:[%s0 + $0x150] sm:$0xff]
  %v53 = vld [vmem:[%s0 + $0x158] sm:$0xff]
  %v54 = vld [vmem:[%s0 + $0x160] sm:$0xff]
  %v55 = vld [vmem:[%s0 + $0x168] sm:$0xff]
  %v56 = vld [vmem:[%s0 + $0x170] sm:$0xff]
  %v57 = vld [vmem:[%s0 + $0x178] sm:$0xff]
  %v58 = vld [vmem:[%s0 + $0x180] sm:$0xff]
  %v59 = vld [vmem:[%s0 + $0x188] sm:$0xff]
  %v60 = vld [vmem:[%s0 + $0x190] sm:$0xff]
  %v61 = vld [vmem:[%s0 + $0x198] sm:$0xff]
  %v62 = vld [vmem:[%s0 + $0x1a0] sm:$0xff]
  %v63 = vld [vmem:[%s0 + $0x1a8] sm:$0xff]
  %v64 = vld [vmem:[%s0 + $0x1b0] sm:$0xff]
  %v65 = vld [vmem:[%s0 + $0x1b8] sm:$0xff]
  %v66 = vld [vmem:[%s0 + $0x1c0] sm:$0xff]
  %v67 = vld [vmem:[%s0 + $0x1c8] sm:$0xff]
  %v68 = vld [vmem:[%s0 + $0x1d0] sm:$0xff]
  %v69 = vld [vmem:[%s0 + $0x1d8] sm:$0xff]
  %v70 = vld [vmem:[%s0 + $0x1e0] sm:$0xff]
  %v71 = vld [vmem:[%s0 + $0x1e8] sm:$0xff]
  %v72 = vld [vmem:[%s0 + $0x1f0] sm:$0xff]
  %v73 = vld [vmem:[%s0 + $0x1f8] sm:$0xff]
  %vm74 = vcmask 64512
  %v75 = vsel %vm74, %v10, 0.0
  %v76 = vsel %vm74, %v11, 0.0
  %v77 = vadd.f32 %v75, %v76
  %v78 = vsel %vm74, %v12, 0.0
  %v79 = vadd.f32 %v77, %v78
  %v80 = vsel %vm74, %v13, 0.0
  %v81 = vadd.f32 %v79, %v80
  %v82 = vsel %vm74, %v14, 0.0
  %v83 = vadd.f32 %v81, %v82
  %v84 = vsel %vm74, %v15, 0.0
  %v85 = vadd.f32 %v83, %v84
  %v86 = vsel %vm74, %v16, 0.0
  %v87 = vadd.f32 %v85, %v86
  %v88 = vsel %vm74, %v17, 0.0
  %v89 = vadd.f32 %v87, %v88
  %v90 = vsel %vm74, %v18, 0.0
  %v91 = vadd.f32 %v89, %v90
  %v92 = vsel %vm74, %v19, 0.0
  %v93 = vadd.f32 %v91, %v92
  %v94 = vsel %vm74, %v20, 0.0
  %v95 = vadd.f32 %v93, %v94
  %v96 = vsel %vm74, %v21, 0.0
  %v97 = vadd.f32 %v95, %v96
  %v98 = vsel %vm74, %v22, 0.0
  %v99 = vadd.f32 %v97, %v98
  %v100 = vsel %vm74, %v23, 0.0
  %v101 = vadd.f32 %v99, %v100
  %v102 = vsel %vm74, %v24, 0.0
  %v103 = vadd.f32 %v101, %v102
  %v104 = vsel %vm74, %v25, 0.0
  %v105 = vadd.f32 %v103, %v104
  %v106 = vrot.slane %v105, 4
  %v107 = vadd.f32 %v105, %v106
  %v108 = vrot.slane %v107, 2
  %v109 = vadd.f32 %v107, %v108
  %v110 = vrot.slane %v109, 1
  %v111 = vadd.f32 %v109, %v110
  %v112 = vsel %vm74, %v26, 0.0
  %v113 = vsel %vm74, %v27, 0.0
  %v114 = vadd.f32 %v112, %v113
  %v115 = vsel %vm74, %v28, 0.0
  %v116 = vadd.f32 %v114, %v115
  %v117 = vsel %vm74, %v29, 0.0
  %v118 = vadd.f32 %v116, %v117
  %v119 = vsel %vm74, %v30, 0.0
  %v120 = vadd.f32 %v118, %v119
  %v121 = vsel %vm74, %v31, 0.0
  %v122 = vadd.f32 %v120, %v121
  %v123 = vsel %vm74, %v32, 0.0
  %v124 = vadd.f32 %v122, %v123
  %v125 = vsel %vm74, %v33, 0.0
  %v126 = vadd.f32 %v124, %v125
  %v127 = vsel %vm74, %v34, 0.0
  %v128 = vadd.f32 %v126, %v127
  %v129 = vsel %vm74, %v35, 0.0
  %v130 = vadd.f32 %v128, %v129
  %v131 = vsel %vm74, %v36, 0.0
  %v132 = vadd.f32 %v130, %v131
  %v133 = vsel %vm74, %v37, 0.0
  %v134 = vadd.f32 %v132, %v133
  %v135 = vsel %vm74, %v38, 0.0
  %v136 = vadd.f32 %v134, %v135
  %v137 = vsel %vm74, %v39, 0.0
  %v138 = vadd.f32 %v136, %v137
  %v139 = vsel %vm74, %v40, 0.0
  %v140 = vadd.f32 %v138, %v139
  %v141 = vsel %vm74, %v41, 0.0
  %v142 = vadd.f32 %v140, %v141
  %v143 = vrot.slane %v142, 4
  %v144 = vadd.f32 %v142, %v143
  %v145 = vrot.slane %v144, 2
  %v146 = vadd.f32 %v144, %v145
  %v147 = vrot.slane %v146, 1
  %v148 = vadd.f32 %v146, %v147
  %v149 = vsel %vm74, %v42, 0.0
  %v150 = vsel %vm74, %v43, 0.0
  %v151 = vadd.f32 %v149, %v150
  %v152 = vsel %vm74, %v44, 0.0
  %v153 = vadd.f32 %v151, %v152
  %v154 = vsel %vm74, %v45, 0.0
  %v155 = vadd.f32 %v153, %v154
  %v156 = vsel %vm74, %v46, 0.0
  %v157 = vadd.f32 %v155, %v156
  %v158 = vsel %vm74, %v47, 0.0
  %v159 = vadd.f32 %v157, %v158
  %v160 = vsel %vm74, %v48, 0.0
  %v161 = vadd.f32 %v159, %v160
  %v162 = vsel %vm74, %v49, 0.0
  %v163 = vadd.f32 %v161, %v162
  %v164 = vsel %vm74, %v50, 0.0
  %v165 = vadd.f32 %v163, %v164
  %v166 = vsel %vm74, %v51, 0.0
  %v167 = vadd.f32 %v165, %v166
  %v168 = vsel %vm74, %v52, 0.0
  %v169 = vadd.f32 %v167, %v168
  %v170 = vsel %vm74, %v53, 0.0
  %v171 = vadd.f32 %v169, %v170
  %v172 = vsel %vm74, %v54, 0.0
  %v173 = vadd.f32 %v171, %v172
  %v174 = vsel %vm74, %v55, 0.0
  %v175 = vadd.f32 %v173, %v174
  %v176 = vsel %vm74, %v56, 0.0
  %v177 = vadd.f32 %v175, %v176
  %v178 = vsel %vm74, %v57, 0.0
  %v179 = vadd.f32 %v177, %v178
  %v180 = vrot.slane %v179, 4
  %v181 = vadd.f32 %v179, %v180
  %v182 = vrot.slane %v181, 2
  %v183 = vadd.f32 %v181, %v182
  %v184 = vrot.slane %v183, 1
  %v185 = vadd.f32 %v183, %v184
  %v186 = vsel %vm74, %v58, 0.0
  %v187 = vsel %vm74, %v59, 0.0
  %v188 = vadd.f32 %v186, %v187
  %v189 = vsel %vm74, %v60, 0.0
  %v190 = vadd.f32 %v188, %v189
  %v191 = vsel %vm74, %v61, 0.0
  %v192 = vadd.f32 %v190, %v191
  %v193 = vsel %vm74, %v62, 0.0
  %v194 = vadd.f32 %v192, %v193
  %v195 = vsel %vm74, %v63, 0.0
  %v196 = vadd.f32 %v194, %v195
  %v197 = vsel %vm74, %v64, 0.0
  %v198 = vadd.f32 %v196, %v197
  %v199 = vsel %vm74, %v65, 0.0
  %v200 = vadd.f32 %v198, %v199
  %v201 = vsel %vm74, %v66, 0.0
  %v202 = vadd.f32 %v200, %v201
  %v203 = vsel %vm74, %v67, 0.0
  %v204 = vadd.f32 %v202, %v203
  %v205 = vsel %vm74, %v68, 0.0
  %v206 = vadd.f32 %v204, %v205
  %v207 = vsel %vm74, %v69, 0.0
  %v208 = vadd.f32 %v206, %v207
  %v209 = vsel %vm74, %v70, 0.0
  %v210 = vadd.f32 %v208, %v209
  %v211 = vsel %vm74, %v71, 0.0
  %v212 = vadd.f32 %v210, %v211
  %v213 = vsel %vm74, %v72, 0.0
  %v214 = vadd.f32 %v212, %v213
  %v215 = vsel %vm74, %v73, 0.0
  %v216 = vadd.f32 %v214, %v215
  %v217 = vrot.slane %v216, 4
  %v218 = vadd.f32 %v216, %v217
  %v219 = vrot.slane %v218, 2
  %v220 = vadd.f32 %v218, %v219
  %v221 = vrot.slane %v220, 1
  %v222 = vadd.f32 %v220, %v221
  %v223 = vmul.f32 %v10, %v10
  %v224 = vmul.f32 %v11, %v11
  %v225 = vmul.f32 %v12, %v12
  %v226 = vmul.f32 %v13, %v13
  %v227 = vmul.f32 %v14, %v14
  %v228 = vmul.f32 %v15, %v15
  %v229 = vmul.f32 %v16, %v16
  %v230 = vmul.f32 %v17, %v17
  %v231 = vmul.f32 %v18, %v18
  %v232 = vmul.f32 %v19, %v19
  %v233 = vmul.f32 %v20, %v20
  %v234 = vmul.f32 %v21, %v21
  %v235 = vmul.f32 %v22, %v22
  %v236 = vmul.f32 %v23, %v23
  %v237 = vmul.f32 %v24, %v24
  %v238 = vmul.f32 %v25, %v25
  %v239 = vmul.f32 %v26, %v26
  %v240 = vmul.f32 %v27, %v27
  %v241 = vmul.f32 %v28, %v28
  %v242 = vmul.f32 %v29, %v29
  %v243 = vmul.f32 %v30, %v30
  %v244 = vmul.f32 %v31, %v31
  %v245 = vmul.f32 %v32, %v32
  %v246 = vmul.f32 %v33, %v33
  %v247 = vmul.f32 %v34, %v34
  %v248 = vmul.f32 %v35, %v35
  %v249 = vmul.f32 %v36, %v36
  %v250 = vmul.f32 %v37, %v37
  %v251 = vmul.f32 %v38, %v38
  %v252 = vmul.f32 %v39, %v39
  %v253 = vmul.f32 %v40, %v40
  %v254 = vmul.f32 %v41, %v41
  %v255 = vmul.f32 %v42, %v42
  %v256 = vmul.f32 %v43, %v43
  %v257 = vmul.f32 %v44, %v44
  %v258 = vmul.f32 %v45, %v45
  %v259 = vmul.f32 %v46, %v46
  %v260 = vmul.f32 %v47, %v47
  %v261 = vmul.f32 %v48, %v48
  %v262 = vmul.f32 %v49, %v49
  %v263 = vmul.f32 %v50, %v50
  %v264 = vmul.f32 %v51, %v51
  %v265 = vmul.f32 %v52, %v52
  %v266 = vmul.f32 %v53, %v53
  %v267 = vmul.f32 %v54, %v54
  %v268 = vmul.f32 %v55, %v55
  %v269 = vmul.f32 %v56, %v56
  %v270 = vmul.f32 %v57, %v57
  %v271 = vmul.f32 %v58, %v58
  %v272 = vmul.f32 %v59, %v59
  %v273 = vmul.f32 %v60, %v60
  %v274 = vmul.f32 %v61, %v61
  %v275 = vmul.f32 %v62, %v62
  %v276 = vmul.f32 %v63, %v63
  %v277 = vmul.f32 %v64, %v64
  %v278 = vmul.f32 %v65, %v65
  %v279 = vmul.f32 %v66, %v66
  %v280 = vmul.f32 %v67, %v67
  %v281 = vmul.f32 %v68, %v68
  %v282 = vmul.f32 %v69, %v69
  %v283 = vmul.f32 %v70, %v70
  %v284 = vmul.f32 %v71, %v71
  %v285 = vmul.f32 %v72, %v72
  %v286 = vmul.f32 %v73, %v73
  %v287 = vsel %vm74, %v223, 0.0
  %v288 = vsel %vm74, %v224, 0.0
  %v289 = vadd.f32 %v287, %v288
  %v290 = vsel %vm74, %v225, 0.0
  %v291 = vadd.f32 %v289, %v290
  %v292 = vsel %vm74, %v226, 0.0
  %v293 = vadd.f32 %v291, %v292
  %v294 = vsel %vm74, %v227, 0.0
  %v295 = vadd.f32 %v293, %v294
  %v296 = vsel %vm74, %v228, 0.0
  %v297 = vadd.f32 %v295, %v296
  %v298 = vsel %vm74, %v229, 0.0
  %v299 = vadd.f32 %v297, %v298
  %v300 = vsel %vm74, %v230, 0.0
  %v301 = vadd.f32 %v299, %v300
  %v302 = vsel %vm74, %v231, 0.0
  %v303 = vadd.f32 %v301, %v302
  %v304 = vsel %vm74, %v232, 0.0
  %v305 = vadd.f32 %v303, %v304
  %v306 = vsel %vm74, %v233, 0.0
  %v307 = vadd.f32 %v305, %v306
  %v308 = vsel %vm74, %v234, 0.0
  %v309 = vadd.f32 %v307, %v308
  %v310 = vsel %vm74, %v235, 0.0
  %v311 = vadd.f32 %v309, %v310
  %v312 = vsel %vm74, %v236, 0.0
  %v313 = vadd.f32 %v311, %v312
  %v314 = vsel %vm74, %v237, 0.0
  %v315 = vadd.f32 %v313, %v314
  %v316 = vsel %vm74, %v238, 0.0
  %v317 = vadd.f32 %v315, %v316
  %v318 = vrot.slane %v317, 4
  %v319 = vadd.f32 %v317, %v318
  %v320 = vrot.slane %v319, 2
  %v321 = vadd.f32 %v319, %v320
  %v322 = vrot.slane %v321, 1
  %v323 = vadd.f32 %v321, %v322
  %v324 = vsel %vm74, %v239, 0.0
  %v325 = vsel %vm74, %v240, 0.0
  %v326 = vadd.f32 %v324, %v325
  %v327 = vsel %vm74, %v241, 0.0
  %v328 = vadd.f32 %v326, %v327
  %v329 = vsel %vm74, %v242, 0.0
  %v330 = vadd.f32 %v328, %v329
  %v331 = vsel %vm74, %v243, 0.0
  %v332 = vadd.f32 %v330, %v331
  %v333 = vsel %vm74, %v244, 0.0
  %v334 = vadd.f32 %v332, %v333
  %v335 = vsel %vm74, %v245, 0.0
  %v336 = vadd.f32 %v334, %v335
  %v337 = vsel %vm74, %v246, 0.0
  %v338 = vadd.f32 %v336, %v337
  %v339 = vsel %vm74, %v247, 0.0
  %v340 = vadd.f32 %v338, %v339
  %v341 = vsel %vm74, %v248, 0.0
  %v342 = vadd.f32 %v340, %v341
  %v343 = vsel %vm74, %v249, 0.0
  %v344 = vadd.f32 %v342, %v343
  %v345 = vsel %vm74, %v250, 0.0
  %v346 = vadd.f32 %v344, %v345
  %v347 = vsel %vm74, %v251, 0.0
  %v348 = vadd.f32 %v346, %v347
  %v349 = vsel %vm74, %v252, 0.0
  %v350 = vadd.f32 %v348, %v349
  %v351 = vsel %vm74, %v253, 0.0
  %v352 = vadd.f32 %v350, %v351
  %v353 = vsel %vm74, %v254, 0.0
  %v354 = vadd.f32 %v352, %v353
  %v355 = vrot.slane %v354, 4
  %v356 = vadd.f32 %v354, %v355
  %v357 = vrot.slane %v356, 2
  %v358 = vadd.f32 %v356, %v357
  %v359 = vrot.slane %v358, 1
  %v360 = vadd.f32 %v358, %v359
  %v361 = vsel %vm74, %v255, 0.0
  %v362 = vsel %vm74, %v256, 0.0
  %v363 = vadd.f32 %v361, %v362
  %v364 = vsel %vm74, %v257, 0.0
  %v365 = vadd.f32 %v363, %v364
  %v366 = vsel %vm74, %v258, 0.0
  %v367 = vadd.f32 %v365, %v366
  %v368 = vsel %vm74, %v259, 0.0
  %v369 = vadd.f32 %v367, %v368
  %v370 = vsel %vm74, %v260, 0.0
  %v371 = vadd.f32 %v369, %v370
  %v372 = vsel %vm74, %v261, 0.0
  %v373 = vadd.f32 %v371, %v372
  %v374 = vsel %vm74, %v262, 0.0
  %v375 = vadd.f32 %v373, %v374
  %v376 = vsel %vm74, %v263, 0.0
  %v377 = vadd.f32 %v375, %v376
  %v378 = vsel %vm74, %v264, 0.0
  %v379 = vadd.f32 %v377, %v378
  %v380 = vsel %vm74, %v265, 0.0
  %v381 = vadd.f32 %v379, %v380
  %v382 = vsel %vm74, %v266, 0.0
  %v383 = vadd.f32 %v381, %v382
  %v384 = vsel %vm74, %v267, 0.0
  %v385 = vadd.f32 %v383, %v384
  %v386 = vsel %vm74, %v268, 0.0
  %v387 = vadd.f32 %v385, %v386
  %v388 = vsel %vm74, %v269, 0.0
  %v389 = vadd.f32 %v387, %v388
  %v390 = vsel %vm74, %v270, 0.0
  %v391 = vadd.f32 %v389, %v390
  %v392 = vrot.slane %v391, 4
  %v393 = vadd.f32 %v391, %v392
  %v394 = vrot.slane %v393, 2
  %v395 = vadd.f32 %v393, %v394
  %v396 = vrot.slane %v395, 1
  %v397 = vadd.f32 %v395, %v396
  %v398 = vsel %vm74, %v271, 0.0
  %v399 = vsel %vm74, %v272, 0.0
  %v400 = vadd.f32 %v398, %v399
  %v401 = vsel %vm74, %v273, 0.0
  %v402 = vadd.f32 %v400, %v401
  %v403 = vsel %vm74, %v274, 0.0
  %v404 = vadd.f32 %v402, %v403
  %v405 = vsel %vm74, %v275, 0.0
  %v406 = vadd.f32 %v404, %v405
  %v407 = vsel %vm74, %v276, 0.0
  %v408 = vadd.f32 %v406, %v407
  %v409 = vsel %vm74, %v277, 0.0
  %v410 = vadd.f32 %v408, %v409
  %v411 = vsel %vm74, %v278, 0.0
  %v412 = vadd.f32 %v410, %v411
  %v413 = vsel %vm74, %v279, 0.0
  %v414 = vadd.f32 %v412, %v413
  %v415 = vsel %vm74, %v280, 0.0
  %v416 = vadd.f32 %v414, %v415
  %v417 = vsel %vm74, %v281, 0.0
  %v418 = vadd.f32 %v416, %v417
  %v419 = vsel %vm74, %v282, 0.0
  %v420 = vadd.f32 %v418, %v419
  %v421 = vsel %vm74, %v283, 0.0
  %v422 = vadd.f32 %v420, %v421
  %v423 = vsel %vm74, %v284, 0.0
  %v424 = vadd.f32 %v422, %v423
  %v425 = vsel %vm74, %v285, 0.0
  %v426 = vadd.f32 %v424, %v425
  %v427 = vsel %vm74, %v286, 0.0
  %v428 = vadd.f32 %v426, %v427
  %v429 = vrot.slane %v428, 4
  %v430 = vadd.f32 %v428, %v429
  %v431 = vrot.slane %v430, 2
  %v432 = vadd.f32 %v430, %v431
  %v433 = vrot.slane %v432, 1
  %v434 = vadd.f32 %v432, %v433
  %v435 = vsel %vm74, %v111, 0.0
  %v436 = vsel %vm74, %v148, 0.0
  %v437 = vadd.f32 %v435, %v436
  %v438 = vsel %vm74, %v185, 0.0
  %v439 = vadd.f32 %v437, %v438
  %v440 = vsel %vm74, %v222, 0.0
  %v441 = vadd.f32 %v439, %v440
  %vm442 = vcmask 57344
  %443 = vst.msk [vmem:[%s1] sm:$0x1] %vm442, %v441
  %v444 = vsel %vm74, %v323, 0.0
  %v445 = vsel %vm74, %v360, 0.0
  %v446 = vadd.f32 %v444, %v445
  %v447 = vsel %vm74, %v397, 0.0
  %v448 = vadd.f32 %v446, %v447
  %v449 = vsel %vm74, %v434, 0.0
  %v450 = vadd.f32 %v448, %v449
  %451 = vst.msk [vmem:[%s2] sm:$0x1] %vm442, %v450
  // Predicated region
  $region6: #{transition_forward.2} parent=0 // pred_check
    _
  $region7: #{transition_forward.2} parent=0 // pred_check_branch
    %453 = sbr.rel (0) target = $region9
  $region8: #{transition_forward.2} parent=0 // pred_region
    _
  $region9: #{transition_forward.2} parent=0 // pred_fallthru
    _
  // Predicated region
  $region10: #{transition_forward.2} parent=0 // pred_check
    _
  $region11: #{transition_forward.2} parent=0 // pred_check_branch
    %455 = sbr.rel (0) target = $region13
  $region12: #{transition_forward.2} parent=0 // pred_region
    _
  $region13: #{transition_forward.2} parent=0 // pred_fallthru
    _
  // Predicated region
  $region14: #{transition_forward.2} parent=0 // pred_check
    _
  $region15: #{transition_forward.2} parent=0 // pred_check_branch
    %457 = sbr.rel (0) target = $region17
  $region16: #{transition_forward.2} parent=0 // pred_region
    _
  $region17: #{transition_forward.2} parent=0 // pred_fallthru
    _
  // Predicated region
  $region18: #{transition_forward.2} parent=0 // pred_check
    _
  $region19: #{transition_forward.2} parent=0 // pred_check_branch
    %459 = sbr.rel (0) target = $region21
  $region20: #{transition_forward.2} parent=0 // pred_region
    _
  $region21: #{transition_forward.2} parent=0 // pred_fallthru
    _

// kernel: transition_forward.3
$region0: #{transition_forward.3}
  #allocation0 [shape = 'u32[]', space=smem, size = 0x4, offset = 0x4, fixed_abs, tag = 'smem constant byte address 0x4 - core index']
  #allocation1 [shape = 'u32[144,128]{1,0:T(1,128)}', space=vmem, size = 0x12000, scoped, tag = 'internal scratch']
  %s0 = inlined_call_operand.vmem [shape: f32[4,128,8], index: 0, kind: input, shape index: {}]
  %s1 = inlined_call_operand.vmem [shape: f32[1,8], index: 1, kind: input, shape index: {}]
  %s2 = inlined_call_operand.vmem [shape: f32[1,8], index: 2, kind: input, shape index: {}]
  %s3 = inlined_call_operand.vmem [shape: f32[8,4], index: 3, kind: input, shape index: {}]
  %s4 = inlined_call_operand.vmem [shape: f32[128,4], index: 4, kind: output, shape index: {}]
  %s5 = sld [smem:[#allocation0]]
  $region26: #{transition_forward.3} parent=0
    _
  %s7 = ssub.s32 1, %s5
  %s8 = scalar_select 0, %s7, %s5
  // Predicated region
  $region2: #{transition_forward.3} parent=0 // pred_check
    _
  $region3: #{transition_forward.3} parent=0 // pred_check_branch
    %10 = sbr.rel (0) target = $region5
  $region4: #{transition_forward.3} parent=0 // pred_region
    _
  $region5: #{transition_forward.3} parent=0 // pred_fallthru
    _
  // Predicated region
  $region6: #{transition_forward.3} parent=0 // pred_check
    _
  $region7: #{transition_forward.3} parent=0 // pred_check_branch
    %12 = sbr.rel (0) target = $region9
  $region8: #{transition_forward.3} parent=0 // pred_region
    _
  $region9: #{transition_forward.3} parent=0 // pred_fallthru
    _
  // Predicated region
  $region10: #{transition_forward.3} parent=0 // pred_check
    _
  $region11: #{transition_forward.3} parent=0 // pred_check_branch
    %14 = sbr.rel (0) target = $region13
  $region12: #{transition_forward.3} parent=0 // pred_region
    _
  $region13: #{transition_forward.3} parent=0 // pred_fallthru
    _
  // Predicated region
  $region14: #{transition_forward.3} parent=0 // pred_check
    _
  $region15: #{transition_forward.3} parent=0 // pred_check_branch
    %16 = sbr.rel (0) target = $region17
  $region16: #{transition_forward.3} parent=0 // pred_region
    _
  $region17: #{transition_forward.3} parent=0 // pred_fallthru
    _
  %v17 = vld [vmem:[%s0] sm:$0xff]
  %v18 = vld [vmem:[%s0 + $0x8] sm:$0xff]
  %v19 = vld [vmem:[%s0 + $0x10] sm:$0xff]
  %v20 = vld [vmem:[%s0 + $0x18] sm:$0xff]
  %v21 = vld [vmem:[%s0 + $0x20] sm:$0xff]
  %v22 = vld [vmem:[%s0 + $0x28] sm:$0xff]
  %v23 = vld [vmem:[%s0 + $0x30] sm:$0xff]
  %v24 = vld [vmem:[%s0 + $0x38] sm:$0xff]
  %v25 = vld [vmem:[%s0 + $0x40] sm:$0xff]
  %v26 = vld [vmem:[%s0 + $0x48] sm:$0xff]
  %v27 = vld [vmem:[%s0 + $0x50] sm:$0xff]
  %v28 = vld [vmem:[%s0 + $0x58] sm:$0xff]
  %v29 = vld [vmem:[%s0 + $0x60] sm:$0xff]
  %v30 = vld [vmem:[%s0 + $0x68] sm:$0xff]
  %v31 = vld [vmem:[%s0 + $0x70] sm:$0xff]
  %v32 = vld [vmem:[%s0 + $0x78] sm:$0xff]
  %v33 = vld [vmem:[%s0 + $0x80] sm:$0xff]
  %v34 = vld [vmem:[%s0 + $0x88] sm:$0xff]
  %v35 = vld [vmem:[%s0 + $0x90] sm:$0xff]
  %v36 = vld [vmem:[%s0 + $0x98] sm:$0xff]
  %v37 = vld [vmem:[%s0 + $0xa0] sm:$0xff]
  %v38 = vld [vmem:[%s0 + $0xa8] sm:$0xff]
  %v39 = vld [vmem:[%s0 + $0xb0] sm:$0xff]
  %v40 = vld [vmem:[%s0 + $0xb8] sm:$0xff]
  %v41 = vld [vmem:[%s0 + $0xc0] sm:$0xff]
  %v42 = vld [vmem:[%s0 + $0xc8] sm:$0xff]
  %v43 = vld [vmem:[%s0 + $0xd0] sm:$0xff]
  %v44 = vld [vmem:[%s0 + $0xd8] sm:$0xff]
  %v45 = vld [vmem:[%s0 + $0xe0] sm:$0xff]
  %v46 = vld [vmem:[%s0 + $0xe8] sm:$0xff]
  %v47 = vld [vmem:[%s0 + $0xf0] sm:$0xff]
  %v48 = vld [vmem:[%s0 + $0xf8] sm:$0xff]
  %v49 = vld [vmem:[%s0 + $0x100] sm:$0xff]
  %v50 = vld [vmem:[%s0 + $0x108] sm:$0xff]
  %v51 = vld [vmem:[%s0 + $0x110] sm:$0xff]
  %v52 = vld [vmem:[%s0 + $0x118] sm:$0xff]
  %v53 = vld [vmem:[%s0 + $0x120] sm:$0xff]
  %v54 = vld [vmem:[%s0 + $0x128] sm:$0xff]
  %v55 = vld [vmem:[%s0 + $0x130] sm:$0xff]
  %v56 = vld [vmem:[%s0 + $0x138] sm:$0xff]
  %v57 = vld [vmem:[%s0 + $0x140] sm:$0xff]
  %v58 = vld [vmem:[%s0 + $0x148] sm:$0xff]
  %v59 = vld [vmem:[%s0 + $0x150] sm:$0xff]
  %v60 = vld [vmem:[%s0 + $0x158] sm:$0xff]
  %v61 = vld [vmem:[%s0 + $0x160] sm:$0xff]
  %v62 = vld [vmem:[%s0 + $0x168] sm:$0xff]
  %v63 = vld [vmem:[%s0 + $0x170] sm:$0xff]
  %v64 = vld [vmem:[%s0 + $0x178] sm:$0xff]
  %v65 = vld [vmem:[%s0 + $0x180] sm:$0xff]
  %v66 = vld [vmem:[%s0 + $0x188] sm:$0xff]
  %v67 = vld [vmem:[%s0 + $0x190] sm:$0xff]
  %v68 = vld [vmem:[%s0 + $0x198] sm:$0xff]
  %v69 = vld [vmem:[%s0 + $0x1a0] sm:$0xff]
  %v70 = vld [vmem:[%s0 + $0x1a8] sm:$0xff]
  %v71 = vld [vmem:[%s0 + $0x1b0] sm:$0xff]
  %v72 = vld [vmem:[%s0 + $0x1b8] sm:$0xff]
  %v73 = vld [vmem:[%s0 + $0x1c0] sm:$0xff]
  %v74 = vld [vmem:[%s0 + $0x1c8] sm:$0xff]
  %v75 = vld [vmem:[%s0 + $0x1d0] sm:$0xff]
  %v76 = vld [vmem:[%s0 + $0x1d8] sm:$0xff]
  %v77 = vld [vmem:[%s0 + $0x1e0] sm:$0xff]
  %v78 = vld [vmem:[%s0 + $0x1e8] sm:$0xff]
  %v79 = vld [vmem:[%s0 + $0x1f0] sm:$0xff]
  %v80 = vld [vmem:[%s0 + $0x1f8] sm:$0xff]
  %v81 = vld [vmem:[%s1] sm:$0x1]
  %v83 = vlaneseq
  %v84 = vshrl.u32 %v83, 7
  %v85 = vsub.s32 0, %v84
  %v86 = vrot.slane %v81, %v85
  %v88 = vmul.f32 %v17, %v86
  %v89 = vmul.f32 %v18, %v86
  %v90 = vmul.f32 %v19, %v86
  %v91 = vmul.f32 %v20, %v86
  %v92 = vmul.f32 %v21, %v86
  %v93 = vmul.f32 %v22, %v86
  %v94 = vmul.f32 %v23, %v86
  %v95 = vmul.f32 %v24, %v86
  %v96 = vmul.f32 %v25, %v86
  %v97 = vmul.f32 %v26, %v86
  %v98 = vmul.f32 %v27, %v86
  %v99 = vmul.f32 %v28, %v86
  %v100 = vmul.f32 %v29, %v86
  %v101 = vmul.f32 %v30, %v86
  %v102 = vmul.f32 %v31, %v86
  %v103 = vmul.f32 %v32, %v86
  %v104 = vmul.f32 %v33, %v86
  %v105 = vmul.f32 %v34, %v86
  %v106 = vmul.f32 %v35, %v86
  %v107 = vmul.f32 %v36, %v86
  %v108 = vmul.f32 %v37, %v86
  %v109 = vmul.f32 %v38, %v86
  %v110 = vmul.f32 %v39, %v86
  %v111 = vmul.f32 %v40, %v86
  %v112 = vmul.f32 %v41, %v86
  %v113 = vmul.f32 %v42, %v86
  %v114 = vmul.f32 %v43, %v86
  %v115 = vmul.f32 %v44, %v86
  %v116 = vmul.f32 %v45, %v86
  %v117 = vmul.f32 %v46, %v86
  %v118 = vmul.f32 %v47, %v86
  %v119 = vmul.f32 %v48, %v86
  %v120 = vmul.f32 %v49, %v86
  %v121 = vmul.f32 %v50, %v86
  %v122 = vmul.f32 %v51, %v86
  %v123 = vmul.f32 %v52, %v86
  %v124 = vmul.f32 %v53, %v86
  %v125 = vmul.f32 %v54, %v86
  %v126 = vmul.f32 %v55, %v86
  %v127 = vmul.f32 %v56, %v86
  %v128 = vmul.f32 %v57, %v86
  %v129 = vmul.f32 %v58, %v86
  %v130 = vmul.f32 %v59, %v86
  %v131 = vmul.f32 %v60, %v86
  %v132 = vmul.f32 %v61, %v86
  %v133 = vmul.f32 %v62, %v86
  %v134 = vmul.f32 %v63, %v86
  %v135 = vmul.f32 %v64, %v86
  %v136 = vmul.f32 %v65, %v86
  %v137 = vmul.f32 %v66, %v86
  %v138 = vmul.f32 %v67, %v86
  %v139 = vmul.f32 %v68, %v86
  %v140 = vmul.f32 %v69, %v86
  %v141 = vmul.f32 %v70, %v86
  %v142 = vmul.f32 %v71, %v86
  %v143 = vmul.f32 %v72, %v86
  %v144 = vmul.f32 %v73, %v86
  %v145 = vmul.f32 %v74, %v86
  %v146 = vmul.f32 %v75, %v86
  %v147 = vmul.f32 %v76, %v86
  %v148 = vmul.f32 %v77, %v86
  %v149 = vmul.f32 %v78, %v86
  %v150 = vmul.f32 %v79, %v86
  %v151 = vmul.f32 %v80, %v86
  %v152 = vld [vmem:[%s2] sm:$0x1]
  %v154 = vlaneseq
  %v155 = vshrl.u32 %v154, 7
  %v156 = vsub.s32 0, %v155
  %v157 = vrot.slane %v152, %v156
  %v159 = vadd.f32 %v88, %v157
  %v160 = vadd.f32 %v89, %v157
  %v161 = vadd.f32 %v90, %v157
  %v162 = vadd.f32 %v91, %v157
  %v163 = vadd.f32 %v92, %v157
  %v164 = vadd.f32 %v93, %v157
  %v165 = vadd.f32 %v94, %v157
  %v166 = vadd.f32 %v95, %v157
  %v167 = vadd.f32 %v96, %v157
  %v168 = vadd.f32 %v97, %v157
  %v169 = vadd.f32 %v98, %v157
  %v170 = vadd.f32 %v99, %v157
  %v171 = vadd.f32 %v100, %v157
  %v172 = vadd.f32 %v101, %v157
  %v173 = vadd.f32 %v102, %v157
  %v174 = vadd.f32 %v103, %v157
  %v175 = vadd.f32 %v104, %v157
  %v176 = vadd.f32 %v105, %v157
  %v177 = vadd.f32 %v106, %v157
  %v178 = vadd.f32 %v107, %v157
  %v179 = vadd.f32 %v108, %v157
  %v180 = vadd.f32 %v109, %v157
  %v181 = vadd.f32 %v110, %v157
  %v182 = vadd.f32 %v111, %v157
  %v183 = vadd.f32 %v112, %v157
  %v184 = vadd.f32 %v113, %v157
  %v185 = vadd.f32 %v114, %v157
  %v186 = vadd.f32 %v115, %v157
  %v187 = vadd.f32 %v116, %v157
  %v188 = vadd.f32 %v117, %v157
  %v189 = vadd.f32 %v118, %v157
  %v190 = vadd.f32 %v119, %v157
  %v191 = vadd.f32 %v120, %v157
  %v192 = vadd.f32 %v121, %v157
  %v193 = vadd.f32 %v122, %v157
  %v194 = vadd.f32 %v123, %v157
  %v195 = vadd.f32 %v124, %v157
  %v196 = vadd.f32 %v125, %v157
  %v197 = vadd.f32 %v126, %v157
  %v198 = vadd.f32 %v127, %v157
  %v199 = vadd.f32 %v128, %v157
  %v200 = vadd.f32 %v129, %v157
  %v201 = vadd.f32 %v130, %v157
  %v202 = vadd.f32 %v131, %v157
  %v203 = vadd.f32 %v132, %v157
  %v204 = vadd.f32 %v133, %v157
  %v205 = vadd.f32 %v134, %v157
  %v206 = vadd.f32 %v135, %v157
  %v207 = vadd.f32 %v136, %v157
  %v208 = vadd.f32 %v137, %v157
  %v209 = vadd.f32 %v138, %v157
  %v210 = vadd.f32 %v139, %v157
  %v211 = vadd.f32 %v140, %v157
  %v212 = vadd.f32 %v141, %v157
  %v213 = vadd.f32 %v142, %v157
  %v214 = vadd.f32 %v143, %v157
  %v215 = vadd.f32 %v144, %v157
  %v216 = vadd.f32 %v145, %v157
  %v217 = vadd.f32 %v146, %v157
  %v218 = vadd.f32 %v147, %v157
  %v219 = vadd.f32 %v148, %v157
  %v220 = vadd.f32 %v149, %v157
  %v221 = vadd.f32 %v150, %v157
  %v222 = vadd.f32 %v151, %v157
  %v223 = vmax.f32 %v159, 0.0
  %v224 = vmax.f32 %v160, 0.0
  %v225 = vmax.f32 %v161, 0.0
  %v226 = vmax.f32 %v162, 0.0
  %v227 = vmax.f32 %v163, 0.0
  %v228 = vmax.f32 %v164, 0.0
  %v229 = vmax.f32 %v165, 0.0
  %v230 = vmax.f32 %v166, 0.0
  %v231 = vmax.f32 %v167, 0.0
  %v232 = vmax.f32 %v168, 0.0
  %v233 = vmax.f32 %v169, 0.0
  %v234 = vmax.f32 %v170, 0.0
  %v235 = vmax.f32 %v171, 0.0
  %v236 = vmax.f32 %v172, 0.0
  %v237 = vmax.f32 %v173, 0.0
  %v238 = vmax.f32 %v174, 0.0
  %v239 = vmax.f32 %v175, 0.0
  %v240 = vmax.f32 %v176, 0.0
  %v241 = vmax.f32 %v177, 0.0
  %v242 = vmax.f32 %v178, 0.0
  %v243 = vmax.f32 %v179, 0.0
  %v244 = vmax.f32 %v180, 0.0
  %v245 = vmax.f32 %v181, 0.0
  %v246 = vmax.f32 %v182, 0.0
  %v247 = vmax.f32 %v183, 0.0
  %v248 = vmax.f32 %v184, 0.0
  %v249 = vmax.f32 %v185, 0.0
  %v250 = vmax.f32 %v186, 0.0
  %v251 = vmax.f32 %v187, 0.0
  %v252 = vmax.f32 %v188, 0.0
  %v253 = vmax.f32 %v189, 0.0
  %v254 = vmax.f32 %v190, 0.0
  %v255 = vmax.f32 %v191, 0.0
  %v256 = vmax.f32 %v192, 0.0
  %v257 = vmax.f32 %v193, 0.0
  %v258 = vmax.f32 %v194, 0.0
  %v259 = vmax.f32 %v195, 0.0
  %v260 = vmax.f32 %v196, 0.0
  %v261 = vmax.f32 %v197, 0.0
  %v262 = vmax.f32 %v198, 0.0
  %v263 = vmax.f32 %v199, 0.0
  %v264 = vmax.f32 %v200, 0.0
  %v265 = vmax.f32 %v201, 0.0
  %v266 = vmax.f32 %v202, 0.0
  %v267 = vmax.f32 %v203, 0.0
  %v268 = vmax.f32 %v204, 0.0
  %v269 = vmax.f32 %v205, 0.0
  %v270 = vmax.f32 %v206, 0.0
  %v271 = vmax.f32 %v207, 0.0
  %v272 = vmax.f32 %v208, 0.0
  %v273 = vmax.f32 %v209, 0.0
  %v274 = vmax.f32 %v210, 0.0
  %v275 = vmax.f32 %v211, 0.0
  %v276 = vmax.f32 %v212, 0.0
  %v277 = vmax.f32 %v213, 0.0
  %v278 = vmax.f32 %v214, 0.0
  %v279 = vmax.f32 %v215, 0.0
  %v280 = vmax.f32 %v216, 0.0
  %v281 = vmax.f32 %v217, 0.0
  %v282 = vmax.f32 %v218, 0.0
  %v283 = vmax.f32 %v219, 0.0
  %v284 = vmax.f32 %v220, 0.0
  %v285 = vmax.f32 %v221, 0.0
  %v286 = vmax.f32 %v222, 0.0
  %vm287 = vcmask 64512
  %v288 = vsel %vm287, %v223, 0.0
  %v289 = vsel %vm287, %v239, 0.0
  %v290 = vadd.f32 %v288, %v289
  %v291 = vsel %vm287, %v255, 0.0
  %v292 = vadd.f32 %v290, %v291
  %v293 = vsel %vm287, %v271, 0.0
  %v294 = vadd.f32 %v292, %v293
  %v295 = vsel %vm287, %v224, 0.0
  %v296 = vsel %vm287, %v240, 0.0
  %v297 = vadd.f32 %v295, %v296
  %v298 = vsel %vm287, %v256, 0.0
  %v299 = vadd.f32 %v297, %v298
  %v300 = vsel %vm287, %v272, 0.0
  %v301 = vadd.f32 %v299, %v300
  %v302 = vsel %vm287, %v225, 0.0
  %v303 = vsel %vm287, %v241, 0.0
  %v304 = vadd.f32 %v302, %v303
  %v305 = vsel %vm287, %v257, 0.0
  %v306 = vadd.f32 %v304, %v305
  %v307 = vsel %vm287, %v273, 0.0
  %v308 = vadd.f32 %v306, %v307
  %v309 = vsel %vm287, %v226, 0.0
  %v310 = vsel %vm287, %v242, 0.0
  %v311 = vadd.f32 %v309, %v310
  %v312 = vsel %vm287, %v258, 0.0
  %v313 = vadd.f32 %v311, %v312
  %v314 = vsel %vm287, %v274, 0.0
  %v315 = vadd.f32 %v313, %v314
  %v316 = vsel %vm287, %v227, 0.0
  %v317 = vsel %vm287, %v243, 0.0
  %v318 = vadd.f32 %v316, %v317
  %v319 = vsel %vm287, %v259, 0.0
  %v320 = vadd.f32 %v318, %v319
  %v321 = vsel %vm287, %v275, 0.0
  %v322 = vadd.f32 %v320, %v321
  %v323 = vsel %vm287, %v228, 0.0
  %v324 = vsel %vm287, %v244, 0.0
  %v325 = vadd.f32 %v323, %v324
  %v326 = vsel %vm287, %v260, 0.0
  %v327 = vadd.f32 %v325, %v326
  %v328 = vsel %vm287, %v276, 0.0
  %v329 = vadd.f32 %v327, %v328
  %v330 = vsel %vm287, %v229, 0.0
  %v331 = vsel %vm287, %v245, 0.0
  %v332 = vadd.f32 %v330, %v331
  %v333 = vsel %vm287, %v261, 0.0
  %v334 = vadd.f32 %v332, %v333
  %v335 = vsel %vm287, %v277, 0.0
  %v336 = vadd.f32 %v334, %v335
  %v337 = vsel %vm287, %v230, 0.0
  %v338 = vsel %vm287, %v246, 0.0
  %v339 = vadd.f32 %v337, %v338
  %v340 = vsel %vm287, %v262, 0.0
  %v341 = vadd.f32 %v339, %v340
  %v342 = vsel %vm287, %v278, 0.0
  %v343 = vadd.f32 %v341, %v342
  %v344 = vsel %vm287, %v231, 0.0
  %v345 = vsel %vm287, %v247, 0.0
  %v346 = vadd.f32 %v344, %v345
  %v347 = vsel %vm287, %v263, 0.0
  %v348 = vadd.f32 %v346, %v347
  %v349 = vsel %vm287, %v279, 0.0
  %v350 = vadd.f32 %v348, %v349
  %v351 = vsel %vm287, %v232, 0.0
  %v352 = vsel %vm287, %v248, 0.0
  %v353 = vadd.f32 %v351, %v352
  %v354 = vsel %vm287, %v264, 0.0
  %v355 = vadd.f32 %v353, %v354
  %v356 = vsel %vm287, %v280, 0.0
  %v357 = vadd.f32 %v355, %v356
  %v358 = vsel %vm287, %v233, 0.0
  %v359 = vsel %vm287, %v249, 0.0
  %v360 = vadd.f32 %v358, %v359
  %v361 = vsel %vm287, %v265, 0.0
  %v362 = vadd.f32 %v360, %v361
  %v363 = vsel %vm287, %v281, 0.0
  %v364 = vadd.f32 %v362, %v363
  %v365 = vsel %vm287, %v234, 0.0
  %v366 = vsel %vm287, %v250, 0.0
  %v367 = vadd.f32 %v365, %v366
  %v368 = vsel %vm287, %v266, 0.0
  %v369 = vadd.f32 %v367, %v368
  %v370 = vsel %vm287, %v282, 0.0
  %v371 = vadd.f32 %v369, %v370
  %v372 = vsel %vm287, %v235, 0.0
  %v373 = vsel %vm287, %v251, 0.0
  %v374 = vadd.f32 %v372, %v373
  %v375 = vsel %vm287, %v267, 0.0
  %v376 = vadd.f32 %v374, %v375
  %v377 = vsel %vm287, %v283, 0.0
  %v378 = vadd.f32 %v376, %v377
  %v379 = vsel %vm287, %v236, 0.0
  %v380 = vsel %vm287, %v252, 0.0
  %v381 = vadd.f32 %v379, %v380
  %v382 = vsel %vm287, %v268, 0.0
  %v383 = vadd.f32 %v381, %v382
  %v384 = vsel %vm287, %v284, 0.0
  %v385 = vadd.f32 %v383, %v384
  %v386 = vsel %vm287, %v237, 0.0
  %v387 = vsel %vm287, %v253, 0.0
  %v388 = vadd.f32 %v386, %v387
  %v389 = vsel %vm287, %v269, 0.0
  %v390 = vadd.f32 %v388, %v389
  %v391 = vsel %vm287, %v285, 0.0
  %v392 = vadd.f32 %v390, %v391
  %v393 = vsel %vm287, %v238, 0.0
  %v394 = vsel %vm287, %v254, 0.0
  %v395 = vadd.f32 %v393, %v394
  %v396 = vsel %vm287, %v270, 0.0
  %v397 = vadd.f32 %v395, %v396
  %v398 = vsel %vm287, %v286, 0.0
  %v399 = vadd.f32 %v397, %v398
  %v400 = vld [vmem:[%s3] sm:$0xff]
  %v402 = vsel %vm287, %v294, 0
  %v405 = vsel %vm287, %v301, 0
  %v408 = vsel %vm287, %v308, 0
  %v411 = vsel %vm287, %v315, 0
  %v414 = vsel %vm287, %v322, 0
  %v417 = vsel %vm287, %v329, 0
  %v420 = vsel %vm287, %v336, 0
  %v423 = vsel %vm287, %v343, 0
  %v426 = vsel %vm287, %v350, 0
  %v429 = vsel %vm287, %v357, 0
  %v432 = vsel %vm287, %v364, 0
  %v435 = vsel %vm287, %v371, 0
  %v438 = vsel %vm287, %v378, 0
  %v441 = vsel %vm287, %v385, 0
  %v444 = vsel %vm287, %v392, 0
  %v447 = vsel %vm287, %v399, 0
  %449 = vmatprep.subr.mxu0 0.0
  %450 = vmatpush1.msra.mxu0 %v400
  %451 = vmatprep.subr.mxu0 0.0
  %452 = vmatpush1.msra.mxu0 0.0
  %453 = vmatprep.subr.mxu0 0.0
  %454 = vmatpush1.msra.mxu0 0.0
  %455 = vmatprep.subr.mxu0 0.0
  %456 = vmatpush1.msra.mxu0 0.0
  %457 = vmatprep.subr.mxu0 0.0
  %458 = vmatpush1.msra.mxu0 0.0
  %459 = vmatprep.subr.mxu0 0.0
  %460 = vmatpush1.msra.mxu0 0.0
  %461 = vmatprep.subr.mxu0 0.0
  %462 = vmatpush1.msra.mxu0 0.0
  %463 = vmatprep.subr.mxu0 0.0
  %464 = vmatpush1.msra.mxu0 0.0
  %465 = vmatprep.subr.mxu0 0.0
  %466 = vmatpush1.msra.mxu0 0.0
  %467 = vmatprep.subr.mxu0 0.0
  %468 = vmatpush1.msra.mxu0 0.0
  %469 = vmatprep.subr.mxu0 0.0
  %470 = vmatpush1.msra.mxu0 0.0
  %471 = vmatprep.subr.mxu0 0.0
  %472 = vmatpush1.msra.mxu0 0.0
  %473 = vmatprep.subr.mxu0 0.0
  %474 = vmatpush1.msra.mxu0 0.0
  %475 = vmatprep.subr.mxu0 0.0
  %476 = vmatpush1.msra.mxu0 0.0
  %477 = vmatprep.subr.mxu0 0.0
  %478 = vmatpush1.msra.mxu0 0.0
  %479 = vmatprep.subr.mxu0 0.0
  %480 = vmatpush1.msra.mxu0 0.0
  %481 = vmatprep.subr.mxu0 0.0
  %482 = vmatpush1.msra.mxu0 0.0
  %483 = vmatprep.subr.mxu0 0.0
  %484 = vmatpush1.msra.mxu0 0.0
  %485 = vmatprep.subr.mxu0 0.0
  %486 = vmatpush1.msra.mxu0 0.0
  %487 = vmatprep.subr.mxu0 0.0
  %488 = vmatpush1.msra.mxu0 0.0
  %489 = vmatprep.subr.mxu0 0.0
  %490 = vmatpush1.msra.mxu0 0.0
  %491 = vmatprep.subr.mxu0 0.0
  %492 = vmatpush1.msra.mxu0 0.0
  %493 = vmatprep.subr.mxu0 0.0
  %494 = vmatpush1.msra.mxu0 0.0
  %495 = vmatprep.subr.mxu0 0.0
  %496 = vmatpush1.msra.mxu0 0.0
  %497 = vmatprep.subr.mxu0 0.0
  %498 = vmatpush1.msra.mxu0 0.0
  %499 = vmatprep.subr.mxu0 0.0
  %500 = vmatpush1.msra.mxu0 0.0
  %501 = vmatprep.subr.mxu0 0.0
  %502 = vmatpush1.msra.mxu0 0.0
  %503 = vmatprep.subr.mxu0 0.0
  %504 = vmatpush1.msra.mxu0 0.0
  %505 = vmatprep.subr.mxu0 0.0
  %506 = vmatpush1.msra.mxu0 0.0
  %507 = vmatprep.subr.mxu0 0.0
  %508 = vmatpush1.msra.mxu0 0.0
  %509 = vmatprep.subr.mxu0 0.0
  %510 = vmatpush1.msra.mxu0 0.0
  %511 = vmatprep.subr.mxu0 0.0
  %512 = vmatpush1.msra.mxu0 0.0
  %513 = vmatprep.mubr.f32.mxu0 0.0
  %514 = vmatmul.mubr.f32.gmra.mrb[0].mxu0 %v402
  %v515 = vpop.f32.mrb[0].mxu0
  %v516 = vadd.f32 0.0, %v515
  %v517 = vpop.f32.mrb[0].mxu0
  %518 = vmatprep.mubr.f32.mxu0 0.0
  %519 = vmatmul.mubr.f32.gmra.mrb[0].mxu0 %v405
  %v520 = vpop.f32.mrb[0].mxu0
  %v521 = vadd.f32 0.0, %v520
  %v522 = vpop.f32.mrb[0].mxu0
  %523 = vmatprep.mubr.f32.mxu0 0.0
  %524 = vmatmul.mubr.f32.gmra.mrb[0].mxu0 %v408
  %v525 = vpop.f32.mrb[0].mxu0
  %v526 = vadd.f32 0.0, %v525
  %v527 = vpop.f32.mrb[0].mxu0
  %528 = vmatprep.mubr.f32.mxu0 0.0
  %529 = vmatmul.mubr.f32.gmra.mrb[0].mxu0 %v411
  %v530 = vpop.f32.mrb[0].mxu0
  %v531 = vadd.f32 0.0, %v530
  %v532 = vpop.f32.mrb[0].mxu0
  %533 = vmatprep.mubr.f32.mxu0 0.0
  %534 = vmatmul.mubr.f32.gmra.mrb[0].mxu0 %v414
  %v535 = vpop.f32.mrb[0].mxu0
  %v536 = vadd.f32 0.0, %v535
  %v537 = vpop.f32.mrb[0].mxu0
  %538 = vmatprep.mubr.f32.mxu0 0.0
  %539 = vmatmul.mubr.f32.gmra.mrb[0].mxu0 %v417
  %v540 = vpop.f32.mrb[0].mxu0
  %v541 = vadd.f32 0.0, %v540
  %v542 = vpop.f32.mrb[0].mxu0
  %543 = vmatprep.mubr.f32.mxu0 0.0
  %544 = vmatmul.mubr.f32.gmra.mrb[0].mxu0 %v420
  %v545 = vpop.f32.mrb[0].mxu0
  %v546 = vadd.f32 0.0, %v545
  %v547 = vpop.f32.mrb[0].mxu0
  %548 = vmatprep.mubr.f32.mxu0 0.0
  %549 = vmatmul.mubr.f32.gmra.mrb[0].mxu0 %v423
  %v550 = vpop.f32.mrb[0].mxu0
  %v551 = vadd.f32 0.0, %v550
  %v552 = vpop.f32.mrb[0].mxu0
  %553 = vmatprep.mubr.f32.mxu0 0.0
  %554 = vmatmul.mubr.f32.gmra.mrb[0].mxu0 %v426
  %v555 = vpop.f32.mrb[0].mxu0
  %v556 = vadd.f32 0.0, %v555
  %v557 = vpop.f32.mrb[0].mxu0
  %558 = vmatprep.mubr.f32.mxu0 0.0
  %559 = vmatmul.mubr.f32.gmra.mrb[0].mxu0 %v429
  %v560 = vpop.f32.mrb[0].mxu0
  %v561 = vadd.f32 0.0, %v560
  %v562 = vpop.f32.mrb[0].mxu0
  %563 = vmatprep.mubr.f32.mxu0 0.0
  %564 = vmatmul.mubr.f32.gmra.mrb[0].mxu0 %v432
  %v565 = vpop.f32.mrb[0].mxu0
  %v566 = vadd.f32 0.0, %v565
  %v567 = vpop.f32.mrb[0].mxu0
  %568 = vmatprep.mubr.f32.mxu0 0.0
  %569 = vmatmul.mubr.f32.gmra.mrb[0].mxu0 %v435
  %v570 = vpop.f32.mrb[0].mxu0
  %v571 = vadd.f32 0.0, %v570
  %v572 = vpop.f32.mrb[0].mxu0
  %573 = vmatprep.mubr.f32.mxu0 0.0
  %574 = vmatmul.mubr.f32.gmra.mrb[0].mxu0 %v438
  %v575 = vpop.f32.mrb[0].mxu0
  %v576 = vadd.f32 0.0, %v575
  %v577 = vpop.f32.mrb[0].mxu0
  %578 = vmatprep.mubr.f32.mxu0 0.0
  %579 = vmatmul.mubr.f32.gmra.mrb[0].mxu0 %v441
  %v580 = vpop.f32.mrb[0].mxu0
  %v581 = vadd.f32 0.0, %v580
  %v582 = vpop.f32.mrb[0].mxu0
  %583 = vmatprep.mubr.f32.mxu0 0.0
  %584 = vmatmul.mubr.f32.gmra.mrb[0].mxu0 %v444
  %v585 = vpop.f32.mrb[0].mxu0
  %v586 = vadd.f32 0.0, %v585
  %v587 = vpop.f32.mrb[0].mxu0
  %588 = vmatprep.mubr.f32.mxu0 0.0
  %589 = vmatmul.mubr.f32.gmra.mrb[0].mxu0 %v447
  %v590 = vpop.f32.mrb[0].mxu0
  %v591 = vadd.f32 0.0, %v590
  %v592 = vpop.f32.mrb[0].mxu0
  %593 = vdwg.mxu0
  %vm594 = vcmask 31744
  %595 = vst.msk [vmem:[%s4] sm:$0xff] %vm594, %v516
  %596 = vst.msk [vmem:[%s4 + $0x8] sm:$0xff] %vm594, %v521
  %597 = vst.msk [vmem:[%s4 + $0x10] sm:$0xff] %vm594, %v526
  %598 = vst.msk [vmem:[%s4 + $0x18] sm:$0xff] %vm594, %v531
  %599 = vst.msk [vmem:[%s4 + $0x20] sm:$0xff] %vm594, %v536
  %600 = vst.msk [vmem:[%s4 + $0x28] sm:$0xff] %vm594, %v541
  %601 = vst.msk [vmem:[%s4 + $0x30] sm:$0xff] %vm594, %v546
  %602 = vst.msk [vmem:[%s4 + $0x38] sm:$0xff] %vm594, %v551
  %603 = vst.msk [vmem:[%s4 + $0x40] sm:$0xff] %vm594, %v556
  %604 = vst.msk [vmem:[%s4 + $0x48] sm:$0xff] %vm594, %v561
  %605 = vst.msk [vmem:[%s4 + $0x50] sm:$0xff] %vm594, %v566
  %606 = vst.msk [vmem:[%s4 + $0x58] sm:$0xff] %vm594, %v571
  %607 = vst.msk [vmem:[%s4 + $0x60] sm:$0xff] %vm594, %v576
  %608 = vst.msk [vmem:[%s4 + $0x68] sm:$0xff] %vm594, %v581
  %609 = vst.msk [vmem:[%s4 + $0x70] sm:$0xff] %vm594, %v586
  %610 = vst.msk [vmem:[%s4 + $0x78] sm:$0xff] %vm594, %v591
  // Predicated region
  $region18: #{transition_forward.3} parent=0 // pred_check
    _
  $region19: #{transition_forward.3} parent=0 // pred_check_branch
    %612 = sbr.rel (0) target = $region21
  $region20: #{transition_forward.3} parent=0 // pred_region
    _
  $region21: #{transition_forward.3} parent=0 // pred_fallthru
    _
  // Predicated region
  $region22: #{transition_forward.3} parent=0 // pred_check
    _
  $region23: #{transition_forward.3} parent=0 // pred_check_branch
    %614 = sbr.rel (0) target = $region25
  $region24: #{transition_forward.3} parent=0 // pred_region
    _
  $region25: #{transition_forward.3} parent=0 // pred_fallthru
    _

</llo_original>
